<compile_context>
chip_gen: v6e
topology: v6e:2x2x1
jax: 0.10.0
libtpu: 0.0.40
codegen_flags: <defaults>
</compile_context>

<pallas_src>
import functools

import jax
import jax.numpy as jnp
from jax import lax
from jax.experimental import pallas as pl
from jax.experimental.pallas import tpu as pltpu

LANE = 512                         # lane-dense width (multiple of 128)
MAX_TILE_ROWS = 2048               # (2048, 512) f32 tile = 4 MiB per input buffer
VMEM_LIMIT_BYTES = 48 * 1024 * 1024
SMALL_FALLBACK_ELEMS = 1 << 18     # below this, plain XLA beats kernel launch cost


def _sublane_multiple(dtype):
    # Native f32 tiling is (8, 128); sub-32-bit dtypes pack along sublanes.
    itemsize = int(jnp.dtype(dtype).itemsize)
    return max(8, 32 // max(itemsize, 1))


def _composite_loss_kernel(r_ref, t_ref, out_ref, acc_l1, acc_sq, *,
                           rows_total, tile_rows, need_mask):
    """Streams one (tile_rows, LANE) tile; accumulates sum|d| and sum d^2."""
    i = pl.program_id(0)

    @pl.when(i == 0)
    def _():
        acc_l1[...] = jnp.zeros_like(acc_l1)
        acc_sq[...] = jnp.zeros_like(acc_sq)

    d = r_ref[...].astype(jnp.float32) - t_ref[...].astype(jnp.float32)

    if need_mask:
        # The last tile over-covers the (rows_total, LANE) array; out-of-bounds
        # rows hold unspecified data.  Zero them before |.| / (.)^2 so they
        # contribute nothing to either sum (also kills any NaN garbage).
        valid = rows_total - i * tile_rows
        row_ids = lax.broadcasted_iota(jnp.int32, d.shape, 0)
        d = jnp.where(row_ids < valid, d, 0.0)

    a = jnp.abs(d)
    s = d * d

    tr, lane = d.shape  # static block shape
    if tr % 8 == 0:
        # Fold the tile's rows into 8 sublanes with plain vreg adds (VALU only);
        # no cross-lane XLU work inside the hot loop.
        acc_l1[...] += a.reshape(tr // 8, 8, lane).sum(axis=0)
        acc_sq[...] += s.reshape(tr // 8, 8, lane).sum(axis=0)
    else:
        # Single full-array tile whose row count is not a multiple of 8
        # (only happens when the whole input is one block).
        acc_l1[0:1, :] = acc_l1[0:1, :] + a.sum(axis=0, keepdims=True)
        acc_sq[0:1, :] = acc_sq[0:1, :] + s.sum(axis=0, keepdims=True)

    @pl.when(i == pl.num_programs(0) - 1)
    def _():
        # Single cross-lane (XLU) reduction, once, at the very end.
        out_ref[0] = jnp.sum(acc_l1[...])
        out_ref[1] = jnp.sum(acc_sq[...])


def composite_loss_pallas(renders, target_renders, *, max_tile_rows=MAX_TILE_ROWS):
    """Fused L1 + MSE (mean) losses via a single Pallas streaming pass.

    Requires renders.size % LANE == 0 (the lane-dense reshape is then a pure
    bitcast — no HBM copy).  Use composite_loss() for the general entry point.
    """
    assert renders.shape == target_renders.shape, (renders.shape, target_renders.shape)
    total = int(renders.size)
    if total % LANE != 0:
        raise ValueError(
            f"composite_loss_pallas requires size % {LANE} == 0, got {total}")

    rows = total // LANE
    # Zero-copy lane-dense view (contiguous row-major reshape == bitcast).
    r2 = renders.reshape(rows, LANE)
    t2 = target_renders.reshape(rows, LANE)

    sub = max(_sublane_multiple(renders.dtype),
              _sublane_multiple(target_renders.dtype))
    max_tile = max(sub, (int(max_tile_rows) // sub) * sub)
    tile_rows = rows if rows <= max_tile else max_tile   # full block if small
    num_tiles = pl.cdiv(rows, tile_rows)
    need_mask = (rows % tile_rows) != 0

    kernel = functools.partial(
        _composite_loss_kernel,
        rows_total=rows, tile_rows=tile_rows, need_mask=need_mask)

    in_bytes = (total * int(jnp.dtype(renders.dtype).itemsize)
                + total * int(jnp.dtype(target_renders.dtype).itemsize))

    sums = pl.pallas_call(
        kernel,
        out_shape=jax.ShapeDtypeStruct((2,), jnp.float32),
        grid_spec=pltpu.PrefetchScalarGridSpec(
            num_scalar_prefetch=0,
            grid=(num_tiles,),
            in_specs=[
                pl.BlockSpec((tile_rows, LANE), lambda i: (i, 0)),
                pl.BlockSpec((tile_rows, LANE), lambda i: (i, 0)),
            ],
            out_specs=pl.BlockSpec((2,), lambda i: (0,),
                                   memory_space=pltpu.MemorySpace.SMEM),
            scratch_shapes=[
                pltpu.VMEM((8, LANE), jnp.float32),
                pltpu.VMEM((8, LANE), jnp.float32),
            ],
        ),
        compiler_params=pltpu.CompilerParams(
            # TODO(synk): on v7x consider a leading 2-way CORE_PARALLEL axis.
            dimension_semantics=("arbitrary",),
            vmem_limit_bytes=VMEM_LIMIT_BYTES),
        cost_estimate=pl.CostEstimate(
            flops=5 * total, transcendentals=0, bytes_accessed=in_bytes + 8),
    )(r2, t2)

    num_el = jnp.float32(total)
    return {
        "l1_loss": sums[0] / num_el,
        "mse_loss": sums[1] / num_el,
    }


def composite_loss_ref(renders, target_renders, render_infos=None):
    """Pure-JAX reference (also serves as the small/ragged-input fallback)."""
    diff = renders.astype(jnp.float32) - target_renders.astype(jnp.float32)
    return {
        "l1_loss": jnp.mean(jnp.abs(diff)),
        "mse_loss": jnp.mean(diff * diff),
    }


def composite_loss(renders, target_renders, render_infos=None):
    """Mirror of CompositeLoss.forward: returns the merged losses dict."""
    # TODO(synk): only L1 + MSE sub-losses are implemented; render_infos unused.
    assert renders.shape == target_renders.shape
    total = int(renders.size)
    if total < SMALL_FALLBACK_ELEMS or total % LANE != 0:
        # Tiny inputs: launch/setup overhead dominates.  Ragged totals: no
        # zero-copy lane-dense reshape exists.
        # TODO(synk): ragged totals (size % 512 != 0) use the XLA path.
        return composite_loss_ref(renders, target_renders)
    return composite_loss_pallas(renders, target_renders)


if __name__ == "__main__":
    key = jax.random.PRNGKey(0)
    k1, k2, k3, k4, k5, k6 = jax.random.split(key, 6)

    def check(out, ref, tag, rtol=1e-5, atol=1e-5):
        for name in ref:
            got = jax.block_until_ready(out[name])
            want = jax.block_until_ready(ref[name])
            assert jnp.allclose(got, want, rtol=rtol, atol=atol), (
                tag, name, got, want)

    # Small NCHW renders: batch=2, channels=4, spatial=16x16.
    r_s = jax.random.normal(k1, (2, 4, 16, 16), dtype=jnp.float32)
    t_s = jax.random.normal(k2, (2, 4, 16, 16), dtype=jnp.float32)

    # 1) Public wrapper (tiny input -> fused-XLA fallback path).
    check(composite_loss(r_s, t_s, None), composite_loss_ref(r_s, t_s), "fallback")

    # 2) Pallas kernel on the same small input (single full (4, 512) block).
    check(composite_loss_pallas(r_s, t_s), composite_loss_ref(r_s, t_s), "pallas_small")

    # 3) Pallas kernel with a forced tiny tile to exercise the ragged-tail mask
    #    (12 rows of 512; tile_rows=8 -> 2 tiles, last tile has 4 valid rows).
    r_m = jax.random.normal(k3, (2, 3, 32, 32), dtype=jnp.float32)
    t_m = jax.random.normal(k4, (2, 3, 32, 32), dtype=jnp.float32)
    check(composite_loss_pallas(r_m, t_m, max_tile_rows=8),
          composite_loss_ref(r_m, t_m), "pallas_masked")

    # 4) bf16 streaming path (16 rows -> single (16, 512) bf16 block).
    r_b = jax.random.normal(k5, (2, 4, 32, 32), dtype=jnp.float32).astype(jnp.bfloat16)
    t_b = jax.random.normal(k6, (2, 4, 32, 32), dtype=jnp.float32).astype(jnp.bfloat16)
    check(composite_loss_pallas(r_b, t_b), composite_loss_ref(r_b, t_b), "pallas_bf16")

    print("KERNEL_OK")
</pallas_src>

<mosaic_0001>
module attributes {stable_mosaic.version = 11 : i64} {
  func.func @_composite_loss_kernel(%arg0: i32, %arg1: memref<4x512xf32, #tpu.memory_space<vmem>>, %arg2: memref<4x512xf32, #tpu.memory_space<vmem>>, %arg3: memref<2xf32, #tpu.memory_space<smem>>, %arg4: memref<8x512xf32, #tpu.memory_space<vmem>>, %arg5: memref<8x512xf32, #tpu.memory_space<vmem>>) attributes {dimension_semantics = [#tpu.dimension_semantics<arbitrary>], iteration_bounds = array<i64: 1>, scalar_prefetch = 0 : i64, scratch_operands = 2 : i64, tpu.core_type = #tpu.core_type<tc>, window_params = [{transform_indices = @transform_0, window_bounds = array<i64: 4, 512>}, {transform_indices = @transform_1, window_bounds = array<i64: 4, 512>}, {transform_indices = @transform_2, window_bounds = array<i64: 2>}]} {
    %c0_i32 = arith.constant 0 : i32
    %0 = arith.cmpi eq, %arg0, %c0_i32 : i32
    %1 = arith.extui %0 : i1 to i32
    %c0_i32_0 = arith.constant 0 : i32
    %2 = arith.cmpi ne, %1, %c0_i32_0 : i32
    scf.if %2 {
      %cst_15 = arith.constant 0.000000e+00 : f32
      %21 = vector.broadcast %cst_15 : f32 to vector<8x512xf32>
      %c0_16 = arith.constant 0 : index
      %c0_17 = arith.constant 0 : index
      %22 = vector.load %arg4[%c0_16, %c0_17] : memref<8x512xf32, #tpu.memory_space<vmem>>, vector<8x512xf32>
      tpu.vector_store %arg4[%c0_16, %c0_17], %21 {strides = array<i32>} : memref<8x512xf32, #tpu.memory_space<vmem>>, vector<8x512xf32>,
      %cst_18 = arith.constant 0.000000e+00 : f32
      %23 = vector.broadcast %cst_18 : f32 to vector<8x512xf32>
      %c0_19 = arith.constant 0 : index
      %c0_20 = arith.constant 0 : index
      %24 = vector.load %arg5[%c0_19, %c0_20] : memref<8x512xf32, #tpu.memory_space<vmem>>, vector<8x512xf32>
      tpu.vector_store %arg5[%c0_19, %c0_20], %23 {strides = array<i32>} : memref<8x512xf32, #tpu.memory_space<vmem>>, vector<8x512xf32>,
    } else {
    }
    %c0 = arith.constant 0 : index
    %c0_1 = arith.constant 0 : index
    %3 = vector.load %arg1[%c0, %c0_1] : memref<4x512xf32, #tpu.memory_space<vmem>>, vector<4x512xf32>
    %c0_2 = arith.constant 0 : index
    %c0_3 = arith.constant 0 : index
    %4 = vector.load %arg2[%c0_2, %c0_3] : memref<4x512xf32, #tpu.memory_space<vmem>>, vector<4x512xf32>
    %5 = arith.subf %3, %4 : vector<4x512xf32>
    %6 = math.absf %5 : vector<4x512xf32>
    %7 = arith.mulf %5, %5 : vector<4x512xf32>
    %c0_4 = arith.constant 0 : index
    %c0_5 = arith.constant 0 : index
    %8 = vector.load %arg4[%c0_4, %c0_5] : memref<8x512xf32, #tpu.memory_space<vmem>>, vector<1x512xf32>
    %cst = arith.constant dense<0.000000e+00> : vector<512xf32>
    %9 = vector.multi_reduction <add>, %6, %cst [0] : vector<4x512xf32> to vector<512xf32>
    %10 = vector.shape_cast %9 : vector<512xf32> to vector<1x512xf32>
    %11 = arith.addf %8, %10 : vector<1x512xf32>
    %c0_6 = arith.constant 0 : index
    %c0_7 = arith.constant 0 : index
    %12 = vector.load %arg4[%c0_6, %c0_7] : memref<8x512xf32, #tpu.memory_space<vmem>>, vector<1x512xf32>
    tpu.vector_store %arg4[%c0_6, %c0_7], %11 {strides = array<i32>} : memref<8x512xf32, #tpu.memory_space<vmem>>, vector<1x512xf32>,
    %c0_8 = arith.constant 0 : index
    %c0_9 = arith.constant 0 : index
    %13 = vector.load %arg5[%c0_8, %c0_9] : memref<8x512xf32, #tpu.memory_space<vmem>>, vector<1x512xf32>
    %cst_10 = arith.constant dense<0.000000e+00> : vector<512xf32>
    %14 = vector.multi_reduction <add>, %7, %cst_10 [0] : vector<4x512xf32> to vector<512xf32>
    %15 = vector.shape_cast %14 : vector<512xf32> to vector<1x512xf32>
    %16 = arith.addf %13, %15 : vector<1x512xf32>
    %c0_11 = arith.constant 0 : index
    %c0_12 = arith.constant 0 : index
    %17 = vector.load %arg5[%c0_11, %c0_12] : memref<8x512xf32, #tpu.memory_space<vmem>>, vector<1x512xf32>
    tpu.vector_store %arg5[%c0_11, %c0_12], %16 {strides = array<i32>} : memref<8x512xf32, #tpu.memory_space<vmem>>, vector<1x512xf32>,
    %c0_i32_13 = arith.constant 0 : i32
    %18 = arith.cmpi eq, %arg0, %c0_i32_13 : i32
    %19 = arith.extui %18 : i1 to i32
    %c0_i32_14 = arith.constant 0 : i32
    %20 = arith.cmpi ne, %19, %c0_i32_14 : i32
    scf.if %20 {
      %c0_15 = arith.constant 0 : index
      %c0_16 = arith.constant 0 : index
      %21 = vector.load %arg4[%c0_15, %c0_16] : memref<8x512xf32, #tpu.memory_space<vmem>>, vector<8x512xf32>
      %22 = vector.shape_cast %21 : vector<8x512xf32> to vector<1x8x512xf32>
      %cst_17 = arith.constant dense<0.000000e+00> : vector<1xf32>
      %23 = vector.multi_reduction <add>, %22, %cst_17 [1, 2] : vector<1x8x512xf32> to vector<1xf32>
      %24 = vector.shape_cast %23 : vector<1xf32> to vector<1x1x1xf32>
      %25 = vector.extract %24[0, 0, 0] : f32 from vector<1x1x1xf32>
      %c0_18 = arith.constant 0 : index
      %26 = memref.load %arg3[%c0_18] : memref<2xf32, #tpu.memory_space<smem>>
      memref.store %25, %arg3[%c0_18] : memref<2xf32, #tpu.memory_space<smem>>
      %c0_19 = arith.constant 0 : index
      %c0_20 = arith.constant 0 : index
      %27 = vector.load %arg5[%c0_19, %c0_20] : memref<8x512xf32, #tpu.memory_space<vmem>>, vector<8x512xf32>
      %28 = vector.shape_cast %27 : vector<8x512xf32> to vector<1x8x512xf32>
      %cst_21 = arith.constant dense<0.000000e+00> : vector<1xf32>
      %29 = vector.multi_reduction <add>, %28, %cst_21 [1, 2] : vector<1x8x512xf32> to vector<1xf32>
      %30 = vector.shape_cast %29 : vector<1xf32> to vector<1x1x1xf32>
      %31 = vector.extract %30[0, 0, 0] : f32 from vector<1x1x1xf32>
      %c1 = arith.constant 1 : index
      %32 = memref.load %arg3[%c1] : memref<2xf32, #tpu.memory_space<smem>>
      memref.store %31, %arg3[%c1] : memref<2xf32, #tpu.memory_space<smem>>
    } else {
    }
    return
  }
  func.func @transform_0(%arg0: i32) -> (i32, i32) {
    %c0_i32 = arith.constant 0 : i32
    %c0_i32_0 = arith.constant 0 : i32
    return %arg0, %c0_i32 : i32, i32
  }
  func.func @transform_1(%arg0: i32) -> (i32, i32) {
    %c0_i32 = arith.constant 0 : i32
    %c0_i32_0 = arith.constant 0 : i32
    return %arg0, %c0_i32 : i32, i32
  }
  func.func @transform_2(%arg0: i32) -> i32 {
    %c0_i32 = arith.constant 0 : i32
    %c0_i32_0 = arith.constant 0 : i32
    return %c0_i32 : i32
  }
}

</mosaic_0001>

<llo_original>
// kernel: tpu_custom_call.1
$region0: #{tpu_custom_call.1}
  #allocation0 [shape = 'u32[]', space=smem, size = 0x4, offset = 0x4, fixed_abs, tag = 'smem constant byte address 0x4 - core index']
  #allocation1 [shape = 'u32[144,128]{1,0:T(1,128)}', space=vmem, size = 0x12000, scoped, tag = 'internal scratch']
  #allocation2 [shape = 'f32[8,512]{1,0:T(8,128)}', space=vmem, size = 0x4000, scoped, tag = 'scratch operand']
  #allocation3 [shape = 'f32[8,512]{1,0:T(8,128)}', space=vmem, size = 0x4000, scoped, tag = 'scratch operand']
  %s0 = inlined_call_operand.hbm [shape: f32[4,512], index: 0, kind: input, shape index: {}]
  %s1 = inlined_call_operand.hbm [shape: f32[4,512], index: 1, kind: input, shape index: {}]
  %s2 = inlined_call_operand.hbm [shape: f32[2], index: 2, kind: output, shape index: {}]
  %s3 = sld [smem:[#allocation0]]
  $region34: #{tpu_custom_call.1} parent=0
    _
  %s5 = ssub.s32 1, %s3
  %s6 = scalar_select 0, %s5, %s3
  $region1: #{tpu_custom_call.1} parent=0
    #allocation4 [shape = 'u8[8192]{0}', space=vmem, size = 0x2000, scoped, tag = 'input window, operand 0, single buffered']
    #allocation5 [shape = 's32[1]{0}', space=sflag, size = 0x4, scoped, tag = 'scoped memory for tpu_custom_call.1']
    #allocation6 [shape = 's32[1]{0}', space=sflag, size = 0x4, scoped, tag = 'scoped memory for tpu_custom_call.1']
    #allocation7 [shape = 'u8[8192]{0}', space=vmem, size = 0x2000, scoped, tag = 'input window, operand 1, single buffered']
    #allocation8 [shape = 's32[1]{0}', space=sflag, size = 0x4, scoped, tag = 'scoped memory for tpu_custom_call.1']
    #allocation9 [shape = 'u8[512]{0}', space=smem, size = 0x200, scoped, tag = 'output window, operand 0, single buffered']
    %7 = vsyncpa [#allocation5], 0
    %8 = vsyncpa [#allocation8], 0
    %9 = vsyncpa [#allocation6], 0
    // Predicated region
    $region2: #{tpu_custom_call.1} parent=1 // pred_check
      _
    $region3: #{tpu_custom_call.1} parent=1 // pred_check_branch
      %11 = sbr.rel (0) target = $region5
    $region4: #{tpu_custom_call.1} parent=1 // pred_region
      %s13 = ssub.s32 256, 256
      %14 = vsyncadd [#allocation5], %s13
      %s16 = sshll.u32 [#allocation4], 4
      %s17 = int_to_ptr.vmem [resolvable:$true] %s16
      %19 = dma.hbm_to_vmem [thread:$0]  %s0, 256, %s17, [#allocation5]
    $region5: #{tpu_custom_call.1} parent=1 // pred_fallthru
      _
    // Predicated region
    $region6: #{tpu_custom_call.1} parent=1 // pred_check
      _
    $region7: #{tpu_custom_call.1} parent=1 // pred_check_branch
      %21 = sbr.rel (0) target = $region9
    $region8: #{tpu_custom_call.1} parent=1 // pred_region
      %s23 = ssub.s32 256, 256
      %24 = vsyncadd [#allocation8], %s23
      %s26 = sshll.u32 [#allocation7], 4
      %s27 = int_to_ptr.vmem [resolvable:$true] %s26
      %29 = dma.hbm_to_vmem [thread:$0]  %s1, 256, %s27, [#allocation8]
    $region9: #{tpu_custom_call.1} parent=1 // pred_fallthru
      _
    // Predicated region
    $region10: #{tpu_custom_call.1} parent=1 // pred_check
      _
    $region11: #{tpu_custom_call.1} parent=1 // pred_check_branch
      %31 = sbr.rel (0) target = $region13
    $region12: #{tpu_custom_call.1} parent=1 // pred_region
      %32 = dma.done [#allocation5], 256
    $region13: #{tpu_custom_call.1} parent=1 // pred_fallthru
      _
    // Predicated region
    $region14: #{tpu_custom_call.1} parent=1 // pred_check
      _
    $region15: #{tpu_custom_call.1} parent=1 // pred_check_branch
      %34 = sbr.rel (0) target = $region17
    $region16: #{tpu_custom_call.1} parent=1 // pred_region
      %35 = dma.done [#allocation8], 256
    $region17: #{tpu_custom_call.1} parent=1 // pred_fallthru
      _
    %p36 = scmp.eq.s32.totalorder 0, 0
    // Predicated region
    $region18: #{tpu_custom_call.1} parent=1 // pred_check
      %p37 = pneg %p36
    $region19: #{tpu_custom_call.1} parent=1 // pred_check_branch
      %39 = sbr.rel (%p37) target = $region21
    $region20: #{tpu_custom_call.1} parent=1 // pred_region
      %40 = vst [vmem:[#allocation2] sm:$0xff] 0.0
      %41 = vst [vmem:[#allocation2 + $0x8] sm:$0xff] 0.0
      %42 = vst [vmem:[#allocation2 + $0x10] sm:$0xff] 0.0
      %43 = vst [vmem:[#allocation2 + $0x18] sm:$0xff] 0.0
      %44 = vst [vmem:[#allocation3] sm:$0xff] 0.0
      %45 = vst [vmem:[#allocation3 + $0x8] sm:$0xff] 0.0
      %46 = vst [vmem:[#allocation3 + $0x10] sm:$0xff] 0.0
      %47 = vst [vmem:[#allocation3 + $0x18] sm:$0xff] 0.0
    $region21: #{tpu_custom_call.1} parent=1 // pred_fallthru
      _
    %v48 = vld [vmem:[#allocation4] sm:$0xff]
    %v49 = vld [vmem:[#allocation4 + $0x8] sm:$0xff]
    %v50 = vld [vmem:[#allocation7] sm:$0xff]
    %v51 = vld [vmem:[#allocation7 + $0x8] sm:$0xff]
    %v52 = vsub.f32 %v48, %v50
    %v53 = vsub.f32 %v49, %v51
    %v54 = vand.u32 2147483647, %v52
    %v55 = vand.u32 2147483647, %v53
    %v56 = vmul.f32 %v52, %v52
    %v57 = vmul.f32 %v53, %v53
    %v58 = vld [vmem:[#allocation2] ss:$8 sm:$0xf]
    %v61 = vcombine.high %v54, %v54
    %v62 = vcombine.high %v55, %v55
    %vm65 = vcmask 1043456
    %v66 = vsel %vm65, %v54, 0.0
    %v67 = vrot.slane %v66, 4
    %v68 = vadd.f32 %v66, %v67
    %v69 = vrot.slane %v68, 2
    %v70 = vadd.f32 %v68, %v69
    %v71 = vrot.slane %v70, 1
    %v72 = vadd.f32 %v70, %v71
    %v73 = vsel %vm65, %v61, 0.0
    %v74 = vrot.slane %v73, 4
    %v75 = vadd.f32 %v73, %v74
    %v76 = vrot.slane %v75, 2
    %v77 = vadd.f32 %v75, %v76
    %v78 = vrot.slane %v77, 1
    %v79 = vadd.f32 %v77, %v78
    %v80 = vsel %vm65, %v55, 0.0
    %v81 = vrot.slane %v80, 4
    %v82 = vadd.f32 %v80, %v81
    %v83 = vrot.slane %v82, 2
    %v84 = vadd.f32 %v82, %v83
    %v85 = vrot.slane %v84, 1
    %v86 = vadd.f32 %v84, %v85
    %v87 = vsel %vm65, %v62, 0.0
    %v88 = vrot.slane %v87, 4
    %v89 = vadd.f32 %v87, %v88
    %v90 = vrot.slane %v89, 2
    %v91 = vadd.f32 %v89, %v90
    %v92 = vrot.slane %v91, 1
    %v93 = vadd.f32 %v91, %v92
    %v98 = vcombine.low %v72, %v79
    %v99 = vcombine.low %v86, %v93
    %v101 = vunpack.c.l.s4 1966171168
    %v102 = vunpack.c.0.s8 %v101
    %v103 = vlaneseq
    %v104 = vshrl.u32 %v103, 7
    %v105 = vsub.s32 %v102, %v104
    %v106 = vrot.slane %v98, %v105
    %v108 = vunpack.c.l.s4 1966171168
    %v109 = vunpack.c.0.s8 %v108
    %v110 = vlaneseq
    %v111 = vshrl.u32 %v110, 7
    %v112 = vsub.s32 %v109, %v111
    %v113 = vrot.slane %v99, %v112
    %v114 = vcombine.low %v106, %v113
    %v116 = vunpack.c.l.s4 1966171168
    %v117 = vunpack.c.0.s8 %v116
    %v118 = vlaneseq
    %v119 = vshrl.u32 %v118, 7
    %v120 = vsub.s32 %v117, %v119
    %v121 = vrot.slane %v114, %v120
    %v123 = vadd.f32 %v58, %v121
    %v124 = vlaneseq
    %vm125 = vcmp.ge.s32.totalorder %v124, 0
    %vm126 = vcmp.lt.s32.totalorder %v124, 512
    %vm127 = vmand %vm125, %vm126
    %128 = vst.msk [vmem:[#allocation2] ss:$8 sm:$0xf] %vm127, %v123
    %129 = vst.msk [vmem:[#allocation2] ss:$8 sm:$0x0] %vm127, %v123
    %v130 = vld [vmem:[#allocation3] ss:$8 sm:$0xf]
    %v133 = vcombine.high %v56, %v56
    %v134 = vcombine.high %v57, %v57
    %v137 = vsel %vm65, %v56, 0.0
    %v138 = vrot.slane %v137, 4
    %v139 = vadd.f32 %v137, %v138
    %v140 = vrot.slane %v139, 2
    %v141 = vadd.f32 %v139, %v140
    %v142 = vrot.slane %v141, 1
    %v143 = vadd.f32 %v141, %v142
    %v144 = vsel %vm65, %v133, 0.0
    %v145 = vrot.slane %v144, 4
    %v146 = vadd.f32 %v144, %v145
    %v147 = vrot.slane %v146, 2
    %v148 = vadd.f32 %v146, %v147
    %v149 = vrot.slane %v148, 1
    %v150 = vadd.f32 %v148, %v149
    %v151 = vsel %vm65, %v57, 0.0
    %v152 = vrot.slane %v151, 4
    %v153 = vadd.f32 %v151, %v152
    %v154 = vrot.slane %v153, 2
    %v155 = vadd.f32 %v153, %v154
    %v156 = vrot.slane %v155, 1
    %v157 = vadd.f32 %v155, %v156
    %v158 = vsel %vm65, %v134, 0.0
    %v159 = vrot.slane %v158, 4
    %v160 = vadd.f32 %v158, %v159
    %v161 = vrot.slane %v160, 2
    %v162 = vadd.f32 %v160, %v161
    %v163 = vrot.slane %v162, 1
    %v164 = vadd.f32 %v162, %v163
    %v169 = vcombine.low %v143, %v150
    %v170 = vcombine.low %v157, %v164
    %v172 = vunpack.c.l.s4 1966171168
    %v173 = vunpack.c.0.s8 %v172
    %v174 = vlaneseq
    %v175 = vshrl.u32 %v174, 7
    %v176 = vsub.s32 %v173, %v175
    %v177 = vrot.slane %v169, %v176
    %v179 = vunpack.c.l.s4 1966171168
    %v180 = vunpack.c.0.s8 %v179
    %v181 = vlaneseq
    %v182 = vshrl.u32 %v181, 7
    %v183 = vsub.s32 %v180, %v182
    %v184 = vrot.slane %v170, %v183
    %v185 = vcombine.low %v177, %v184
    %v187 = vunpack.c.l.s4 1966171168
    %v188 = vunpack.c.0.s8 %v187
    %v189 = vlaneseq
    %v190 = vshrl.u32 %v189, 7
    %v191 = vsub.s32 %v188, %v190
    %v192 = vrot.slane %v185, %v191
    %v194 = vadd.f32 %v130, %v192
    %195 = vst.msk [vmem:[#allocation3] ss:$8 sm:$0xf] %vm127, %v194
    %196 = vst.msk [vmem:[#allocation3] ss:$8 sm:$0x0] %vm127, %v194
    // Predicated region
    $region22: #{tpu_custom_call.1} parent=1 // pred_check
      %p197 = pneg %p36
    $region23: #{tpu_custom_call.1} parent=1 // pred_check_branch
      %199 = sbr.rel (%p197) target = $region25
    $region24: #{tpu_custom_call.1} parent=1 // pred_region
      %v200 = vld [vmem:[#allocation2] sm:$0xff]
      %v201 = vld [vmem:[#allocation2 + $0x8] sm:$0xff]
      %v202 = vld [vmem:[#allocation2 + $0x10] sm:$0xff]
      %v203 = vld [vmem:[#allocation2 + $0x18] sm:$0xff]
      %v204 = vadd.f32 %v200, %v201
      %v205 = vadd.f32 %v204, %v202
      %v206 = vadd.f32 %v205, %v203
      %207 = vadd.xlane.f32.xlu0 %v206
      %v208 = vpop.xlane.xlu0 %207
      %v209 = vrot.slane %v208, 4
      %v210 = vadd.f32 %v208, %v209
      %v211 = vrot.slane %v210, 2
      %v212 = vadd.f32 %v210, %v211
      %v213 = vrot.slane %v212, 1
      %v214 = vadd.f32 %v212, %v213
      %s215 = vtos %v214
      %s216 = scalar_lea.smem [#allocation9], 0
      %217 = sst [smem:[%s216]] %s215
      %v218 = vld [vmem:[#allocation3] sm:$0xff]
      %v219 = vld [vmem:[#allocation3 + $0x8] sm:$0xff]
      %v220 = vld [vmem:[#allocation3 + $0x10] sm:$0xff]
      %v221 = vld [vmem:[#allocation3 + $0x18] sm:$0xff]
      %v222 = vadd.f32 %v218, %v219
      %v223 = vadd.f32 %v222, %v220
      %v224 = vadd.f32 %v223, %v221
      %225 = vadd.xlane.f32.xlu0 %v224
      %v226 = vpop.xlane.xlu0 %225
      %v227 = vrot.slane %v226, 4
      %v228 = vadd.f32 %v226, %v227
      %v229 = vrot.slane %v228, 2
      %v230 = vadd.f32 %v228, %v229
      %v231 = vrot.slane %v230, 1
      %v232 = vadd.f32 %v230, %v231
      %s233 = vtos %v232
      %s234 = scalar_lea.smem [#allocation9], 1
      %235 = sst [smem:[%s234]] %s233
    $region25: #{tpu_custom_call.1} parent=1 // pred_fallthru
      _
    // Predicated region
    $region26: #{tpu_custom_call.1} parent=1 // pred_check
      _
    $region27: #{tpu_custom_call.1} parent=1 // pred_check_branch
      %237 = sbr.rel (0) target = $region29
    $region28: #{tpu_custom_call.1} parent=1 // pred_region
      %s239 = ssub.s32 16, 16
      %240 = vsyncadd [#allocation6], %s239
      %243 = dma.smem_to_hbm [#allocation9], 16, %s2, [#allocation6]
    $region29: #{tpu_custom_call.1} parent=1 // pred_fallthru
      _
    // Predicated region
    $region30: #{tpu_custom_call.1} parent=1 // pred_check
      _
    $region31: #{tpu_custom_call.1} parent=1 // pred_check_branch
      %245 = sbr.rel (0) target = $region33
    $region32: #{tpu_custom_call.1} parent=1 // pred_region
      %246 = dma.done [#allocation6], 16
    $region33: #{tpu_custom_call.1} parent=1 // pred_fallthru
      _
    %247 = sfence
    %248 = vsyncpa [#allocation5], 1
    %249 = vsyncpa [#allocation8], 1
    %250 = vsyncpa [#allocation6], 1

</llo_original>
